<compile_context>
chip_gen: v6e
topology: v6e:2x2x1
jax: 0.10.0
libtpu: 0.0.40
codegen_flags: <defaults>
</compile_context>

<pallas_src>
import jax
import jax.numpy as jnp
from jax.experimental import pallas as pl
from jax.experimental.pallas import tpu as pltpu


def _polar_pad_kernel(x_ref, o_ref, *, padding):
    # x_ref: (TB, H, W) VMEM tile; o_ref: (TB, H+2p, W+2p) VMEM tile.
    p = padding
    TB, H, W = x_ref.shape
    Ho, Wo = H + 2 * p, W + 2 * p

    x = x_ref[...]                                   # (TB, H, W) — loaded once

    # Width zero-pad: fill only the two thin column strips.
    zstrip = jnp.zeros((TB, Ho, p), dtype=o_ref.dtype)
    o_ref[:, :, 0:p] = zstrip
    o_ref[:, :, W + p:Wo] = zstrip

    # Central block: original image shifted by (p, p).
    o_ref[:, p:H + p, p:W + p] = x

    # Circular height pad: bottom p rows go on top, top p rows go on bottom.
    o_ref[:, 0:p, p:W + p] = x[:, H - p:H, :]
    o_ref[:, H + p:Ho, p:W + p] = x[:, 0:p, :]


def _pick_block(bc, per_slice_bytes, budget_bytes=3 << 20):
    """Largest divisor of bc whose (in + out) block stays under the budget.

    Budget keeps double-buffered in+out VMEM well under the 16 MiB scoped
    default of the smallest generation (v5e), so no vmem_limit override is
    needed on any chip.
    """
    cap = max(1, budget_bytes // max(1, per_slice_bytes))
    tb = 1
    for d in range(1, bc + 1):
        if bc % d == 0 and d <= cap:
            tb = d
    return tb


def polar_padding(x, padding):
    """x: (B, C, H, W). Returns (B, C, H+2*padding, W+2*padding)."""
    if padding <= 0:
        return x
    B, C, H, W = x.shape
    p = padding
    if p > H:
        raise ValueError(
            f"padding ({p}) must be <= H ({H}) for single-wrap circular pad")
    Ho, Wo = H + 2 * p, W + 2 * p
    BC = B * C
    x_flat = x.reshape(BC, H, W)

    dtype_bytes = jnp.dtype(x.dtype).itemsize
    per_slice = (H * W + Ho * Wo) * dtype_bytes
    TB = _pick_block(BC, per_slice)

    kernel = lambda xr, orf: _polar_pad_kernel(xr, orf, padding=p)

    out_flat = pl.pallas_call(
        kernel,
        out_shape=jax.ShapeDtypeStruct((BC, Ho, Wo), x.dtype),
        grid_spec=pltpu.PrefetchScalarGridSpec(
            num_scalar_prefetch=0,
            grid=(BC // TB,),
            in_specs=[pl.BlockSpec((TB, H, W), lambda i: (i, 0, 0))],
            out_specs=pl.BlockSpec((TB, Ho, Wo), lambda i: (i, 0, 0)),
        ),
        compiler_params=pltpu.CompilerParams(
            dimension_semantics=("parallel",)),
    )(x_flat)
    return out_flat.reshape(B, C, Ho, Wo)


def _reference(x, padding):
    p = padding
    if p <= 0:
        return x
    xw = jnp.pad(x, ((0, 0), (0, 0), (0, 0), (p, p)))
    top = xw[..., 0:p, :]
    bottom = xw[..., xw.shape[-2] - p:, :]
    return jnp.concatenate([bottom, xw, top], axis=-2)


if __name__ == "__main__":
    key = jax.random.PRNGKey(0)
    B, C, H, W = 2, 4, 16, 16
    padding = 2
    x = jax.random.normal(key, (B, C, H, W), dtype=jnp.float32)

    out = polar_padding(x, padding)
    out = jax.block_until_ready(out)

    ref = _reference(x, padding)
    assert out.shape == (B, C, H + 2 * padding, W + 2 * padding), out.shape
    assert jnp.allclose(out, ref), "mismatch vs reference"
    print("KERNEL_OK")
</pallas_src>

<mosaic_0001>
module attributes {stable_mosaic.version = 11 : i64} {
  func.func @_lambda_(%arg0: i32, %arg1: memref<8x16x16xf32, #tpu.memory_space<vmem>>, %arg2: memref<8x20x20xf32, #tpu.memory_space<vmem>>) attributes {dimension_semantics = [#tpu.dimension_semantics<parallel>], iteration_bounds = array<i64: 1>, scalar_prefetch = 0 : i64, scratch_operands = 0 : i64, tpu.core_type = #tpu.core_type<tc>, window_params = [{transform_indices = @transform_0, window_bounds = array<i64: 8, 16, 16>}, {transform_indices = @transform_1, window_bounds = array<i64: 8, 20, 20>}]} {
    %c0 = arith.constant 0 : index
    %c0_0 = arith.constant 0 : index
    %c0_1 = arith.constant 0 : index
    %0 = vector.load %arg1[%c0, %c0_0, %c0_1] : memref<8x16x16xf32, #tpu.memory_space<vmem>>, vector<8x16x16xf32>
    %cst = arith.constant 0.000000e+00 : f32
    %1 = vector.broadcast %cst : f32 to vector<8x20x2xf32>
    %c0_2 = arith.constant 0 : index
    %c0_3 = arith.constant 0 : index
    %c0_4 = arith.constant 0 : index
    %2 = vector.load %arg2[%c0_2, %c0_3, %c0_4] : memref<8x20x20xf32, #tpu.memory_space<vmem>>, vector<8x20x2xf32>
    tpu.vector_store %arg2[%c0_2, %c0_3, %c0_4], %1 {strides = array<i32>} : memref<8x20x20xf32, #tpu.memory_space<vmem>>, vector<8x20x2xf32>,
    %c0_5 = arith.constant 0 : index
    %c0_6 = arith.constant 0 : index
    %c18 = arith.constant 18 : index
    %3 = vector.load %arg2[%c0_5, %c0_6, %c18] : memref<8x20x20xf32, #tpu.memory_space<vmem>>, vector<8x20x2xf32>
    tpu.vector_store %arg2[%c0_5, %c0_6, %c18], %1 {strides = array<i32>} : memref<8x20x20xf32, #tpu.memory_space<vmem>>, vector<8x20x2xf32>,
    %c0_7 = arith.constant 0 : index
    %c2 = arith.constant 2 : index
    %c2_8 = arith.constant 2 : index
    %4 = vector.load %arg2[%c0_7, %c2, %c2_8] : memref<8x20x20xf32, #tpu.memory_space<vmem>>, vector<8x16x16xf32>
    tpu.vector_store %arg2[%c0_7, %c2, %c2_8], %0 {strides = array<i32>} : memref<8x20x20xf32, #tpu.memory_space<vmem>>, vector<8x16x16xf32>,
    %5 = vector.extract_strided_slice %0 {offsets = [0, 14, 0], sizes = [8, 2, 16], strides = [1, 1, 1]} : vector<8x16x16xf32> to vector<8x2x16xf32>
    %c0_9 = arith.constant 0 : index
    %c0_10 = arith.constant 0 : index
    %c2_11 = arith.constant 2 : index
    %6 = vector.load %arg2[%c0_9, %c0_10, %c2_11] : memref<8x20x20xf32, #tpu.memory_space<vmem>>, vector<8x2x16xf32>
    tpu.vector_store %arg2[%c0_9, %c0_10, %c2_11], %5 {strides = array<i32>} : memref<8x20x20xf32, #tpu.memory_space<vmem>>, vector<8x2x16xf32>,
    %7 = vector.extract_strided_slice %0 {offsets = [0, 0, 0], sizes = [8, 2, 16], strides = [1, 1, 1]} : vector<8x16x16xf32> to vector<8x2x16xf32>
    %c0_12 = arith.constant 0 : index
    %c18_13 = arith.constant 18 : index
    %c2_14 = arith.constant 2 : index
    %8 = vector.load %arg2[%c0_12, %c18_13, %c2_14] : memref<8x20x20xf32, #tpu.memory_space<vmem>>, vector<8x2x16xf32>
    tpu.vector_store %arg2[%c0_12, %c18_13, %c2_14], %7 {strides = array<i32>} : memref<8x20x20xf32, #tpu.memory_space<vmem>>, vector<8x2x16xf32>,
    return
  }
  func.func @transform_0(%arg0: i32) -> (i32, i32, i32) {
    %c0_i32 = arith.constant 0 : i32
    %c0_i32_0 = arith.constant 0 : i32
    %c0_i32_1 = arith.constant 0 : i32
    return %arg0, %c0_i32, %c0_i32_0 : i32, i32, i32
  }
  func.func @transform_1(%arg0: i32) -> (i32, i32, i32) {
    %c0_i32 = arith.constant 0 : i32
    %c0_i32_0 = arith.constant 0 : i32
    %c0_i32_1 = arith.constant 0 : i32
    return %arg0, %c0_i32, %c0_i32_0 : i32, i32, i32
  }
}

</mosaic_0001>

<llo_original>
// kernel: tpu_custom_call.1
$region0: #{tpu_custom_call.1}
  #allocation0 [shape = 'u32[]', space=smem, size = 0x4, offset = 0x4, fixed_abs, tag = 'smem constant byte address 0x4 - core index']
  #allocation1 [shape = 'u32[144,128]{1,0:T(1,128)}', space=vmem, size = 0x12000, scoped, tag = 'internal scratch']
  %s0 = inlined_call_operand.hbm [shape: f32[8,16,16], index: 0, kind: input, shape index: {}]
  %s1 = inlined_call_operand.vmem [shape: f32[8,20,20], index: 1, kind: output, shape index: {}]
  %s2 = sld [smem:[#allocation0]]
  $region18: #{tpu_custom_call.1} parent=0
    _
  %s4 = ssub.s32 1, %s2
  %s5 = scalar_select 0, %s4, %s2
  $region1: #{tpu_custom_call.1} parent=0
    #allocation2 [shape = 'u8[65536]{0}', space=vmem, size = 0x10000, scoped, tag = 'input window, operand 0, single buffered']
    #allocation3 [shape = 's32[1]{0}', space=sflag, size = 0x4, scoped, tag = 'scoped memory for tpu_custom_call.1']
    %6 = vsyncpa [#allocation3], 0
    // Predicated region
    $region2: #{tpu_custom_call.1} parent=1 // pred_check
      _
    $region3: #{tpu_custom_call.1} parent=1 // pred_check_branch
      %8 = sbr.rel (0) target = $region5
    $region4: #{tpu_custom_call.1} parent=1 // pred_region
      %s10 = ssub.s32 2048, 2048
      %11 = vsyncadd [#allocation3], %s10
      %s12 = sshll.u32 [#allocation2], 4
      %s13 = int_to_ptr.vmem [resolvable:$true] %s12
      %18 = dma.hbm_to_vmem [thread:$0]  %s0, 2048, %s13, [#allocation3], 128, 128, 8
    $region5: #{tpu_custom_call.1} parent=1 // pred_fallthru
      _
    // Predicated region
    $region6: #{tpu_custom_call.1} parent=1 // pred_check
      _
    $region7: #{tpu_custom_call.1} parent=1 // pred_check_branch
      %20 = sbr.rel (0) target = $region9
    $region8: #{tpu_custom_call.1} parent=1 // pred_region
      %21 = dma.done [#allocation3], 2048
    $region9: #{tpu_custom_call.1} parent=1 // pred_fallthru
      _
    %v22 = vld [vmem:[#allocation2] sm:$0xff]
    %v23 = vld [vmem:[#allocation2 + $0x8] sm:$0xff]
    %v24 = vld [vmem:[#allocation2 + $0x10] sm:$0xff]
    %v25 = vld [vmem:[#allocation2 + $0x18] sm:$0xff]
    %v26 = vld [vmem:[#allocation2 + $0x20] sm:$0xff]
    %v27 = vld [vmem:[#allocation2 + $0x28] sm:$0xff]
    %v28 = vld [vmem:[#allocation2 + $0x30] sm:$0xff]
    %v29 = vld [vmem:[#allocation2 + $0x38] sm:$0xff]
    %v30 = vld [vmem:[#allocation2 + $0x40] sm:$0xff]
    %v31 = vld [vmem:[#allocation2 + $0x48] sm:$0xff]
    %v32 = vld [vmem:[#allocation2 + $0x50] sm:$0xff]
    %v33 = vld [vmem:[#allocation2 + $0x58] sm:$0xff]
    %v34 = vld [vmem:[#allocation2 + $0x60] sm:$0xff]
    %v35 = vld [vmem:[#allocation2 + $0x68] sm:$0xff]
    %v36 = vld [vmem:[#allocation2 + $0x70] sm:$0xff]
    %v37 = vld [vmem:[#allocation2 + $0x78] sm:$0xff]
    %vm38 = vcmask 15360
    %39 = vst.msk [vmem:[%s1] sm:$0xff] %vm38, 0.0
    %40 = vst.msk [vmem:[%s1 + $0x8] sm:$0xff] %vm38, 0.0
    %vm41 = vcmask 11264
    %42 = vst.msk [vmem:[%s1 + $0x10] sm:$0xf] %vm41, 0.0
    %43 = vst.msk [vmem:[%s1 + $0x18] sm:$0xff] %vm38, 0.0
    %44 = vst.msk [vmem:[%s1 + $0x20] sm:$0xff] %vm38, 0.0
    %45 = vst.msk [vmem:[%s1 + $0x28] sm:$0xf] %vm41, 0.0
    %46 = vst.msk [vmem:[%s1 + $0x30] sm:$0xff] %vm38, 0.0
    %47 = vst.msk [vmem:[%s1 + $0x38] sm:$0xff] %vm38, 0.0
    %48 = vst.msk [vmem:[%s1 + $0x40] sm:$0xf] %vm41, 0.0
    %49 = vst.msk [vmem:[%s1 + $0x48] sm:$0xff] %vm38, 0.0
    %50 = vst.msk [vmem:[%s1 + $0x50] sm:$0xff] %vm38, 0.0
    %51 = vst.msk [vmem:[%s1 + $0x58] sm:$0xf] %vm41, 0.0
    %52 = vst.msk [vmem:[%s1 + $0x60] sm:$0xff] %vm38, 0.0
    %53 = vst.msk [vmem:[%s1 + $0x68] sm:$0xff] %vm38, 0.0
    %54 = vst.msk [vmem:[%s1 + $0x70] sm:$0xf] %vm41, 0.0
    %55 = vst.msk [vmem:[%s1 + $0x78] sm:$0xff] %vm38, 0.0
    %56 = vst.msk [vmem:[%s1 + $0x80] sm:$0xff] %vm38, 0.0
    %57 = vst.msk [vmem:[%s1 + $0x88] sm:$0xf] %vm41, 0.0
    %58 = vst.msk [vmem:[%s1 + $0x90] sm:$0xff] %vm38, 0.0
    %59 = vst.msk [vmem:[%s1 + $0x98] sm:$0xff] %vm38, 0.0
    %60 = vst.msk [vmem:[%s1 + $0xa0] sm:$0xf] %vm41, 0.0
    %61 = vst.msk [vmem:[%s1 + $0xa8] sm:$0xff] %vm38, 0.0
    %62 = vst.msk [vmem:[%s1 + $0xb0] sm:$0xff] %vm38, 0.0
    %63 = vst.msk [vmem:[%s1 + $0xb8] sm:$0xf] %vm41, 0.0
    %vm64 = vcmask 162960
    %65 = vst.msk [vmem:[%s1] sm:$0xff] %vm64, 0.0
    %66 = vst.msk [vmem:[%s1 + $0x8] sm:$0xff] %vm64, 0.0
    %vm67 = vcmask 158864
    %68 = vst.msk [vmem:[%s1 + $0x10] sm:$0xf] %vm67, 0.0
    %69 = vst.msk [vmem:[%s1 + $0x18] sm:$0xff] %vm64, 0.0
    %70 = vst.msk [vmem:[%s1 + $0x20] sm:$0xff] %vm64, 0.0
    %71 = vst.msk [vmem:[%s1 + $0x28] sm:$0xf] %vm67, 0.0
    %72 = vst.msk [vmem:[%s1 + $0x30] sm:$0xff] %vm64, 0.0
    %73 = vst.msk [vmem:[%s1 + $0x38] sm:$0xff] %vm64, 0.0
    %74 = vst.msk [vmem:[%s1 + $0x40] sm:$0xf] %vm67, 0.0
    %75 = vst.msk [vmem:[%s1 + $0x48] sm:$0xff] %vm64, 0.0
    %76 = vst.msk [vmem:[%s1 + $0x50] sm:$0xff] %vm64, 0.0
    %77 = vst.msk [vmem:[%s1 + $0x58] sm:$0xf] %vm67, 0.0
    %78 = vst.msk [vmem:[%s1 + $0x60] sm:$0xff] %vm64, 0.0
    %79 = vst.msk [vmem:[%s1 + $0x68] sm:$0xff] %vm64, 0.0
    %80 = vst.msk [vmem:[%s1 + $0x70] sm:$0xf] %vm67, 0.0
    %81 = vst.msk [vmem:[%s1 + $0x78] sm:$0xff] %vm64, 0.0
    %82 = vst.msk [vmem:[%s1 + $0x80] sm:$0xff] %vm64, 0.0
    %83 = vst.msk [vmem:[%s1 + $0x88] sm:$0xf] %vm67, 0.0
    %84 = vst.msk [vmem:[%s1 + $0x90] sm:$0xff] %vm64, 0.0
    %85 = vst.msk [vmem:[%s1 + $0x98] sm:$0xff] %vm64, 0.0
    %86 = vst.msk [vmem:[%s1 + $0xa0] sm:$0xf] %vm67, 0.0
    %87 = vst.msk [vmem:[%s1 + $0xa8] sm:$0xff] %vm64, 0.0
    %88 = vst.msk [vmem:[%s1 + $0xb0] sm:$0xff] %vm64, 0.0
    %89 = vst.msk [vmem:[%s1 + $0xb8] sm:$0xf] %vm67, 0.0
    %106 = vrot.lane.b32.xlu0 %v22, 2
    %v107 = vpop.permute.xlu0 %106
    %108 = vrot.lane.b32.xlu0 %v23, 2
    %v109 = vpop.permute.xlu0 %108
    %110 = vrot.lane.b32.xlu0 %v24, 2
    %v111 = vpop.permute.xlu0 %110
    %112 = vrot.lane.b32.xlu0 %v25, 2
    %v113 = vpop.permute.xlu0 %112
    %114 = vrot.lane.b32.xlu0 %v26, 2
    %v115 = vpop.permute.xlu0 %114
    %116 = vrot.lane.b32.xlu0 %v27, 2
    %v117 = vpop.permute.xlu0 %116
    %118 = vrot.lane.b32.xlu0 %v28, 2
    %v119 = vpop.permute.xlu0 %118
    %120 = vrot.lane.b32.xlu0 %v29, 2
    %v121 = vpop.permute.xlu0 %120
    %122 = vrot.lane.b32.xlu0 %v30, 2
    %v123 = vpop.permute.xlu0 %122
    %124 = vrot.lane.b32.xlu0 %v31, 2
    %v125 = vpop.permute.xlu0 %124
    %126 = vrot.lane.b32.xlu0 %v32, 2
    %v127 = vpop.permute.xlu0 %126
    %128 = vrot.lane.b32.xlu0 %v33, 2
    %v129 = vpop.permute.xlu0 %128
    %130 = vrot.lane.b32.xlu0 %v34, 2
    %v131 = vpop.permute.xlu0 %130
    %132 = vrot.lane.b32.xlu0 %v35, 2
    %v133 = vpop.permute.xlu0 %132
    %134 = vrot.lane.b32.xlu0 %v36, 2
    %v135 = vpop.permute.xlu0 %134
    %136 = vrot.lane.b32.xlu0 %v37, 2
    %v137 = vpop.permute.xlu0 %136
    %vm154 = vcmask 146448
    %155 = vst.msk [vmem:[%s1 + $0x2] sm:$0xff] %vm154, %v107
    %156 = vst.msk [vmem:[%s1 + $0xa] sm:$0xff] %vm154, %v109
    %157 = vst.msk [vmem:[%s1 + $0x1a] sm:$0xff] %vm154, %v111
    %158 = vst.msk [vmem:[%s1 + $0x22] sm:$0xff] %vm154, %v113
    %159 = vst.msk [vmem:[%s1 + $0x32] sm:$0xff] %vm154, %v115
    %160 = vst.msk [vmem:[%s1 + $0x3a] sm:$0xff] %vm154, %v117
    %161 = vst.msk [vmem:[%s1 + $0x4a] sm:$0xff] %vm154, %v119
    %162 = vst.msk [vmem:[%s1 + $0x52] sm:$0xff] %vm154, %v121
    %163 = vst.msk [vmem:[%s1 + $0x62] sm:$0xff] %vm154, %v123
    %164 = vst.msk [vmem:[%s1 + $0x6a] sm:$0xff] %vm154, %v125
    %165 = vst.msk [vmem:[%s1 + $0x7a] sm:$0xff] %vm154, %v127
    %166 = vst.msk [vmem:[%s1 + $0x82] sm:$0xff] %vm154, %v129
    %167 = vst.msk [vmem:[%s1 + $0x92] sm:$0xff] %vm154, %v131
    %168 = vst.msk [vmem:[%s1 + $0x9a] sm:$0xff] %vm154, %v133
    %169 = vst.msk [vmem:[%s1 + $0xaa] sm:$0xff] %vm154, %v135
    %170 = vst.msk [vmem:[%s1 + $0xb2] sm:$0xff] %vm154, %v137
    %vm171 = vcmask 146454
    %172 = vst.msk [vmem:[%s1 - $0x6] sm:$0xc0] %vm171, %v109
    %173 = vst.msk [vmem:[%s1 + $0x12] sm:$0xc0] %vm171, %v113
    %174 = vst.msk [vmem:[%s1 + $0x2a] sm:$0xc0] %vm171, %v117
    %175 = vst.msk [vmem:[%s1 + $0x42] sm:$0xc0] %vm171, %v121
    %176 = vst.msk [vmem:[%s1 + $0x5a] sm:$0xc0] %vm171, %v125
    %177 = vst.msk [vmem:[%s1 + $0x72] sm:$0xc0] %vm171, %v129
    %178 = vst.msk [vmem:[%s1 + $0x8a] sm:$0xc0] %vm171, %v133
    %179 = vst.msk [vmem:[%s1 + $0xa2] sm:$0xc0] %vm171, %v137
    %vm180 = vcmask 140304
    %181 = vst.msk [vmem:[%s1 + $0x12] sm:$0x3] %vm180, %v107
    %182 = vst.msk [vmem:[%s1 + $0x2a] sm:$0x3] %vm180, %v111
    %183 = vst.msk [vmem:[%s1 + $0x42] sm:$0x3] %vm180, %v115
    %184 = vst.msk [vmem:[%s1 + $0x5a] sm:$0x3] %vm180, %v119
    %185 = vst.msk [vmem:[%s1 + $0x72] sm:$0x3] %vm180, %v123
    %186 = vst.msk [vmem:[%s1 + $0x8a] sm:$0x3] %vm180, %v127
    %187 = vst.msk [vmem:[%s1 + $0xa2] sm:$0x3] %vm180, %v131
    %188 = vst.msk [vmem:[%s1 + $0xba] sm:$0x3] %vm180, %v135
    // Predicated region
    $region10: #{tpu_custom_call.1} parent=1 // pred_check
      _
    $region11: #{tpu_custom_call.1} parent=1 // pred_check_branch
      %190 = sbr.rel (0) target = $region13
    $region12: #{tpu_custom_call.1} parent=1 // pred_region
      _
    $region13: #{tpu_custom_call.1} parent=1 // pred_fallthru
      _
    // Predicated region
    $region14: #{tpu_custom_call.1} parent=1 // pred_check
      _
    $region15: #{tpu_custom_call.1} parent=1 // pred_check_branch
      %192 = sbr.rel (0) target = $region17
    $region16: #{tpu_custom_call.1} parent=1 // pred_region
      _
    $region17: #{tpu_custom_call.1} parent=1 // pred_fallthru
      _
    %193 = vsyncpa [#allocation3], 1

</llo_original>
